<compile_context>
chip_gen: v6e
topology: v6e:2x2x1
jax: 0.10.0
libtpu: 0.0.40
codegen_flags: <defaults>
</compile_context>

<pallas_src>
import functools
import math

import jax
import jax.numpy as jnp
from jax.experimental import pallas as pl
from jax.experimental.pallas import tpu as pltpu


# ---------------------------------------------------------------------------
# Kernels
# ---------------------------------------------------------------------------

def _copy_kernel(x_ref, o_ref):
    # Identity copy of the current tile (pure DMA-bound kernel).
    o_ref[...] = x_ref[...]


def _alias_noop_kernel(x_ref, o_ref):
    # Output buffer is aliased to the input buffer (input_output_aliases),
    # so the data is already in place; nothing to do.
    del x_ref, o_ref


# ---------------------------------------------------------------------------
# Helpers
# ---------------------------------------------------------------------------

def _resolve_new_shape(x_shape, dim, shape):
    """torch.view-style shape resolution, including a single -1 wildcard."""
    new_shape = list(x_shape[:dim]) + list(shape) + list(x_shape[dim + 1:])
    total = math.prod(x_shape)
    if new_shape.count(-1) == 1:
        known = math.prod(d for d in new_shape if d != -1)
        assert known > 0 and total % known == 0, "incompatible view shape"
        new_shape[new_shape.index(-1)] = total // known
    assert new_shape.count(-1) == 0, "at most one -1 allowed in view shape"
    assert math.prod(new_shape) == total, "incompatible view shape"
    return tuple(new_shape)


@functools.lru_cache(maxsize=1)
def _tile_budget():
    """(target_tile_bytes, vmem_limit_bytes) derived from this chip's VMEM."""
    try:
        vmem_cap = int(pltpu.get_tpu_info().vmem_capacity_bytes)
    except Exception:
        vmem_cap = 64 * 1024 * 1024  # conservative: assume v7x-sized VMEM
    # ~8 MiB tiles on 128 MiB parts (v5e/v6e), ~4 MiB tiles on 64 MiB (v7x).
    target_tile_bytes = max(2 * 1024 * 1024,
                            min(8 * 1024 * 1024, vmem_cap // 16))
    # Footprint = 2 operands x 2 pipeline buffers x tile = 4x tile; give 2x
    # headroom but never request more than half the physical VMEM.
    vmem_limit = min(vmem_cap // 2,
                     max(32 * 1024 * 1024, 8 * target_tile_bytes))
    return target_tile_bytes, vmem_limit


# ---------------------------------------------------------------------------
# Public entry point
# ---------------------------------------------------------------------------

def view_pallas(x, dim, shape, donate=False):
    """Pallas equivalent of View(dim, shape).forward(x).

    donate=True selects the aliased zero-copy path (use when the caller can
    donate the input buffer, e.g. via jit donate_argnums); otherwise a
    bandwidth-optimized identity copy is performed.
    """
    new_shape = _resolve_new_shape(x.shape, dim, shape)
    total = math.prod(x.shape)

    # Zero-size tensors: nothing to copy, metadata-only reshape.
    if total == 0:
        return x.reshape(new_shape)

    # ---- opt-in zero-copy (aliased) path ---------------------------------
    if donate:
        flat = x.reshape(total)
        out_flat = pl.pallas_call(
            _alias_noop_kernel,
            out_shape=jax.ShapeDtypeStruct(flat.shape, flat.dtype),
            in_specs=[pl.BlockSpec(memory_space=pl.ANY)],
            out_specs=pl.BlockSpec(memory_space=pl.ANY),
            input_output_aliases={0: 0},
        )(flat)
        return out_flat.reshape(new_shape)

    itemsize = jnp.dtype(x.dtype).itemsize
    target_tile_bytes, vmem_limit = _tile_budget()
    cost = pl.CostEstimate(flops=0, transcendentals=0,
                           bytes_accessed=2 * total * itemsize)
    compiler_params = pltpu.CompilerParams(
        # "parallel" shards the copy across both TCs on v7x megacore.
        dimension_semantics=("parallel",),
        vmem_limit_bytes=vmem_limit,
    )

    # ---- lane-dense flattening (largest lane width first) ----------------
    lane_dim = None
    for cand in (2048, 1024, 512, 256, 128):
        if total % cand == 0:
            lane_dim = cand
            break

    if lane_dim is None:
        # total not divisible by 128: tiled (1, K*128) copy with a masked
        # partial last block (replaces the old whole-array single-block
        # fallback, which was a VMEM-OOM cliff for large irregular sizes).
        flat = x.reshape(1, total)
        # Budget the lane block assuming 8x sublane padding of a (1, N) tile.
        lane_block = (target_tile_bytes // (8 * itemsize)) // 128 * 128
        lane_block = max(128, lane_block)
        lane_block = min(lane_block, total)  # full extent for small arrays
        out_flat = pl.pallas_call(
            _copy_kernel,
            out_shape=jax.ShapeDtypeStruct((1, total), flat.dtype),
            grid=(pl.cdiv(total, lane_block),),
            in_specs=[pl.BlockSpec((1, lane_block), lambda i: (0, i))],
            out_specs=pl.BlockSpec((1, lane_block), lambda i: (0, i)),
            compiler_params=compiler_params,
            cost_estimate=cost,
        )(flat)
        return out_flat.reshape(new_shape)

    rows = total // lane_dim
    flat = x.reshape(rows, lane_dim)   # metadata reshape outside the kernel

    # ---- dtype-aware block sizing ----------------------------------------
    sublane = max(8, 32 // itemsize)          # 8 f32 / 16 bf16 / 32 int8
    tile_rows = (target_tile_bytes // (lane_dim * itemsize)) // sublane * sublane
    tile_rows = max(sublane, tile_rows)
    tile_rows = min(tile_rows, rows)          # full extent is always legal

    # Megacore balance: if the copy spans more than one tile, make sure there
    # are >= 2 roughly equal programs so both v7x TensorCores get work.
    if rows > tile_rows:
        half = -(-rows // 2)                      # ceil(rows / 2)
        half = -(-half // sublane) * sublane      # round up to sublane multiple
        tile_rows = min(tile_rows, max(sublane, half))

    grid = (pl.cdiv(rows, tile_rows),)        # partial last block is masked

    out_flat = pl.pallas_call(
        _copy_kernel,
        out_shape=jax.ShapeDtypeStruct((rows, lane_dim), flat.dtype),
        grid=grid,
        in_specs=[pl.BlockSpec((tile_rows, lane_dim), lambda i: (i, 0))],
        out_specs=pl.BlockSpec((tile_rows, lane_dim), lambda i: (i, 0)),
        compiler_params=compiler_params,
        cost_estimate=cost,
    )(flat)

    # Row-major contiguous output -> reshape back is metadata-only.
    return out_flat.reshape(new_shape)


if __name__ == "__main__":
    key = jax.random.PRNGKey(0)
    # Small NCHW input consistent with a VAE bottleneck: batch=2, channels=4, 16x16.
    x = jax.random.normal(key, (2, 4, 16, 16), dtype=jnp.float32)

    # View(dim=1, shape=(2, 2)): [2, 4, 16, 16] -> [2, 2, 2, 16, 16]
    dim, shape = 1, (2, 2)
    out = jax.block_until_ready(view_pallas(x, dim, shape))
    ref = x.reshape((2, 2, 2, 16, 16))
    assert out.shape == (2, 2, 2, 16, 16), out.shape
    assert out.dtype == x.dtype
    assert bool(jnp.array_equal(out, ref))

    # Opt-in aliased (zero-copy when donated) path.
    out_d = jax.block_until_ready(view_pallas(x, dim, shape, donate=True))
    assert out_d.shape == (2, 2, 2, 16, 16), out_d.shape
    assert bool(jnp.array_equal(out_d, ref))

    # -1 (inferred dim) path with a sub-32-bit dtype.
    x2 = jax.random.normal(jax.random.PRNGKey(1), (2, 8, 32), dtype=jnp.bfloat16)
    out2 = jax.block_until_ready(view_pallas(x2, 1, (-1, 4)))
    assert out2.shape == (2, 2, 4, 32), out2.shape
    assert bool(jnp.array_equal(out2, x2.reshape(2, 2, 4, 32)))

    # Element count not divisible by 128 exercises the tiled fallback path.
    x3 = jax.random.normal(jax.random.PRNGKey(2), (2, 3, 25), dtype=jnp.float32)
    out3 = jax.block_until_ready(view_pallas(x3, 1, (3, 1)))
    assert out3.shape == (2, 3, 1, 25), out3.shape
    assert bool(jnp.array_equal(out3, x3.reshape(2, 3, 1, 25)))

    print("KERNEL_OK")
</pallas_src>

<mosaic_0001>
module attributes {stable_mosaic.version = 11 : i64} {
  func.func @_copy_kernel(%arg0: i32, %arg1: memref<1x2048xf32, #tpu.memory_space<vmem>>, %arg2: memref<1x2048xf32, #tpu.memory_space<vmem>>) attributes {dimension_semantics = [#tpu.dimension_semantics<parallel>], iteration_bounds = array<i64: 1>, scalar_prefetch = 0 : i64, scratch_operands = 0 : i64, tpu.core_type = #tpu.core_type<tc>, window_params = [{transform_indices = @transform_0, window_bounds = array<i64: 1, 2048>}, {transform_indices = @transform_1, window_bounds = array<i64: 1, 2048>}]} {
    %c0 = arith.constant 0 : index
    %c0_0 = arith.constant 0 : index
    %0 = vector.load %arg1[%c0, %c0_0] : memref<1x2048xf32, #tpu.memory_space<vmem>>, vector<1x2048xf32>
    %c0_1 = arith.constant 0 : index
    %c0_2 = arith.constant 0 : index
    %1 = vector.load %arg2[%c0_1, %c0_2] : memref<1x2048xf32, #tpu.memory_space<vmem>>, vector<1x2048xf32>
    tpu.vector_store %arg2[%c0_1, %c0_2], %0 {strides = array<i32>} : memref<1x2048xf32, #tpu.memory_space<vmem>>, vector<1x2048xf32>,
    return
  }
  func.func @transform_0(%arg0: i32) -> (i32, i32) {
    %c0_i32 = arith.constant 0 : i32
    %c0_i32_0 = arith.constant 0 : i32
    return %arg0, %c0_i32 : i32, i32
  }
  func.func @transform_1(%arg0: i32) -> (i32, i32) {
    %c0_i32 = arith.constant 0 : i32
    %c0_i32_0 = arith.constant 0 : i32
    return %arg0, %c0_i32 : i32, i32
  }
}

</mosaic_0001>

<llo_original>
// kernel: tpu_custom_call.1
$region0: #{tpu_custom_call.1}
  #allocation0 [shape = 'u32[]', space=smem, size = 0x4, offset = 0x4, fixed_abs, tag = 'smem constant byte address 0x4 - core index']
  #allocation1 [shape = 'u32[144,128]{1,0:T(1,128)}', space=vmem, size = 0x12000, scoped, tag = 'internal scratch']
  %s0 = inlined_call_operand.hbm [shape: f32[1,2048], index: 0, kind: input, shape index: {}]
  %s1 = inlined_call_operand.hbm [shape: f32[1,2048], index: 1, kind: output, shape index: {}]
  %s2 = sld [smem:[#allocation0]]
  $region18: #{tpu_custom_call.1} parent=0
    _
  %s4 = ssub.s32 1, %s2
  %s5 = scalar_select 0, %s4, %s2
  $region1: #{tpu_custom_call.1} parent=0
    #allocation2 [shape = 'u8[8192]{0}', space=vmem, size = 0x2000, scoped, tag = 'input window, operand 0, single buffered']
    #allocation3 [shape = 's32[1]{0}', space=sflag, size = 0x4, scoped, tag = 'scoped memory for tpu_custom_call.1']
    #allocation4 [shape = 's32[1]{0}', space=sflag, size = 0x4, scoped, tag = 'scoped memory for tpu_custom_call.1']
    #allocation5 [shape = 'u8[8192]{0}', space=vmem, size = 0x2000, scoped, tag = 'output window, operand 0, single buffered']
    %6 = vsyncpa [#allocation3], 0
    %7 = vsyncpa [#allocation4], 0
    // Predicated region
    $region2: #{tpu_custom_call.1} parent=1 // pred_check
      _
    $region3: #{tpu_custom_call.1} parent=1 // pred_check_branch
      %9 = sbr.rel (0) target = $region5
    $region4: #{tpu_custom_call.1} parent=1 // pred_region
      %s11 = ssub.s32 256, 256
      %12 = vsyncadd [#allocation3], %s11
      %s14 = sshll.u32 [#allocation2], 4
      %s15 = int_to_ptr.vmem [resolvable:$true] %s14
      %17 = dma.hbm_to_vmem [thread:$0]  %s0, 256, %s15, [#allocation3]
    $region5: #{tpu_custom_call.1} parent=1 // pred_fallthru
      _
    // Predicated region
    $region6: #{tpu_custom_call.1} parent=1 // pred_check
      _
    $region7: #{tpu_custom_call.1} parent=1 // pred_check_branch
      %19 = sbr.rel (0) target = $region9
    $region8: #{tpu_custom_call.1} parent=1 // pred_region
      %20 = dma.done [#allocation3], 256
    $region9: #{tpu_custom_call.1} parent=1 // pred_fallthru
      _
    %v21 = vld [vmem:[#allocation2] sm:$0xff]
    %v22 = vld [vmem:[#allocation2 + $0x8] sm:$0xff]
    %23 = vst [vmem:[#allocation5] sm:$0xff] %v21
    %24 = vst [vmem:[#allocation5 + $0x8] sm:$0xff] %v22
    // Predicated region
    $region10: #{tpu_custom_call.1} parent=1 // pred_check
      _
    $region11: #{tpu_custom_call.1} parent=1 // pred_check_branch
      %26 = sbr.rel (0) target = $region13
    $region12: #{tpu_custom_call.1} parent=1 // pred_region
      %s28 = ssub.s32 256, 256
      %29 = vsyncadd [#allocation4], %s28
      %s31 = sshll.u32 [#allocation5], 4
      %s32 = int_to_ptr.vmem [resolvable:$true] %s31
      %34 = dma.vmem_to_hbm [thread:$0]  %s32, 256, %s1, [#allocation4]
    $region13: #{tpu_custom_call.1} parent=1 // pred_fallthru
      _
    // Predicated region
    $region14: #{tpu_custom_call.1} parent=1 // pred_check
      _
    $region15: #{tpu_custom_call.1} parent=1 // pred_check_branch
      %36 = sbr.rel (0) target = $region17
    $region16: #{tpu_custom_call.1} parent=1 // pred_region
      %37 = dma.done [#allocation4], 256
    $region17: #{tpu_custom_call.1} parent=1 // pred_fallthru
      _
    %38 = vsyncpa [#allocation3], 1
    %39 = vsyncpa [#allocation4], 1

</llo_original>
